<compile_context>
chip_gen: v5e
topology: v5e:2x2
jax: 0.10.0
libtpu: 0.0.40
codegen_flags: <defaults>
</compile_context>

<pallas_src>
import numpy as np
import jax
import jax.numpy as jnp
from jax.experimental import pallas as pl
from jax.experimental.pallas import tpu as pltpu


GRID_SIZE = 3
N = GRID_SIZE * GRID_SIZE          # 9 control points
NC = N + 3                         # 12 coefficients per axis (TPS weights + affine)
OUT_H = 16                         # small spatial size for the test (module default 240x240)
OUT_W = 16
LANE = 128
SUBLANE = 8
BASE = SUBLANE * LANE              # minimal lane-dense f32 tile = 1024 elements
MAX_BLOCK_ELEMS = 64 * 1024        # 64K f32 = 256 KiB per plane per block (VMEM-safe on v5e/v6e/v7x)


def _round_up(x, m):
    return ((x + m - 1) // m) * m


def _make_tps_constants(grid_size=GRID_SIZE):
    """Replicates TpsGridGen.__init__ / compute_L_inverse (deterministic constants)."""
    ax = np.linspace(-1.0, 1.0, grid_size)
    P_Y, P_X = np.meshgrid(ax, ax)                 # same ordering as the torch module
    P_X = P_X.reshape(-1).astype(np.float64)
    P_Y = P_Y.reshape(-1).astype(np.float64)
    n = grid_size * grid_size
    d2 = (P_X[:, None] - P_X[None, :]) ** 2 + (P_Y[:, None] - P_Y[None, :]) ** 2
    d2[d2 == 0.0] = 1.0
    K = d2 * np.log(d2)
    P = np.concatenate([np.ones((n, 1)), P_X[:, None], P_Y[:, None]], axis=1)
    L = np.block([[K, P], [P.T, np.zeros((3, 3))]])
    Li = np.linalg.inv(L)                          # (N+3, N+3)
    # TODO(synk): the matrix inverse itself has no Pallas equivalent; it is a small
    # (12x12) init-time constant, so it stays host-side (numpy), as in the module.
    return P_X.astype(np.float32), P_Y.astype(np.float32), Li.astype(np.float32)


def _choose_tile(hw):
    """Pick a lane-dense tile size (f32 elements, multiple of 8*128)."""
    hw_pad_min = _round_up(hw, BASE)
    if hw_pad_min > 2 * MAX_BLOCK_ELEMS:
        return MAX_BLOCK_ELEMS                     # big image: many max-size tiles
    if hw_pad_min >= 4 * BASE:
        # split in two so the "parallel" tile axis can use both megacore TCs,
        # while keeping tiles as large as possible (per-step overhead ~0.35us).
        return _round_up((hw_pad_min + 1) // 2, BASE)
    return hw_pad_min                              # tiny image: single tile


def _make_kernel(P_X, P_Y):
    """Pallas kernel with the (constant) control points baked in."""
    PX = [float(v) for v in P_X]
    PY = [float(v) for v in P_Y]
    TINY = float(np.float32(1e-30))

    def kernel(coef_ref, gx_ref, gy_ref, out_ref, u_ref):
        # grid = (pixel_tiles, batch); batch is innermost so the U scratch is reused.
        b = pl.program_id(1)
        gx = gx_ref[...]                           # (tile_rows, 128) f32
        gy = gy_ref[...]

        # Batch-invariant radial basis U(r) = r^2 log r^2 (r^2 == 0 -> U = 0):
        # compute once per pixel tile, reuse for every batch element.
        @pl.when(b == 0)
        def _():
            for n in range(N):
                dx = gx - PX[n]
                dy = gy - PY[n]
                d2 = dx * dx + dy * dy
                u_ref[n] = d2 * jnp.log(jnp.maximum(d2, TINY))   # d2==0 -> 0*log(tiny)=0

        # Per-batch coefficients (Li @ theta precomputed in the wrapper):
        # cx = [W_X (N), A_X0, A_X1, A_X2], cy likewise.
        cx = [coef_ref[b, i] for i in range(NC)]
        cy = [coef_ref[b, NC + i] for i in range(NC)]

        xp = cx[N] + cx[N + 1] * gx + cx[N + 2] * gy
        yp = cy[N] + cy[N + 1] * gx + cy[N + 2] * gy
        for n in range(N):                          # unrolled: 2 VPU ops / pt / pixel / axis
            u = u_ref[n]
            xp = xp + cx[n] * u
            yp = yp + cy[n] * u

        out_ref[0, 0] = xp
        out_ref[0, 1] = yp

    return kernel


def tps_grid_gen(theta, grid_x, grid_y, P_X, P_Y, Li):
    """Forward pass of TpsGridGen: theta [B, 2N] (or [B, 2N, 1, 1]) -> warped grid [B, H, W, 2]."""
    theta = jnp.asarray(theta, jnp.float32)
    B = theta.shape[0]
    theta = theta.reshape(B, 2, N)                 # [:, 0, :] = Q_X, [:, 1, :] = Q_Y
    grid_x = jnp.asarray(grid_x, jnp.float32)
    grid_y = jnp.asarray(grid_y, jnp.float32)
    H, W = grid_x.shape
    hw = H * W

    # Coefficient mat-vec [W; A] = Li[:, :N] @ Q done once in XLA (per batch, per axis).
    Li_w = jnp.asarray(Li[:, :N], jnp.float32)            # (NC, N)
    coef = jnp.einsum('kn,bcn->bck', Li_w, theta)         # (B, 2, NC)
    coef = coef.reshape(B, 2 * NC)

    # Lane-dense layout: flatten spatial, pad to a multiple of the tile, view as [rows, 128].
    tile_elems = _choose_tile(hw)
    hw_pad = _round_up(hw, tile_elems)
    rows_total = hw_pad // LANE
    tile_rows = tile_elems // LANE
    n_tiles = hw_pad // tile_elems
    pad = hw_pad - hw
    gx_r = jnp.pad(grid_x.reshape(-1), (0, pad)).reshape(rows_total, LANE)
    gy_r = jnp.pad(grid_y.reshape(-1), (0, pad)).reshape(rows_total, LANE)

    kernel = _make_kernel(P_X, P_Y)
    out = pl.pallas_call(
        kernel,
        out_shape=jax.ShapeDtypeStruct((B, 2, rows_total, LANE), jnp.float32),
        grid_spec=pltpu.PrefetchScalarGridSpec(
            num_scalar_prefetch=0,
            grid=(n_tiles, B),                                         # batch innermost
            in_specs=[
                pl.BlockSpec(memory_space=pltpu.MemorySpace.SMEM),     # coef [B, 2*NC]
                pl.BlockSpec((tile_rows, LANE), lambda t, b: (t, 0)),  # gx tile (no re-DMA over b)
                pl.BlockSpec((tile_rows, LANE), lambda t, b: (t, 0)),  # gy tile
            ],
            out_specs=pl.BlockSpec((1, 2, tile_rows, LANE),
                                   lambda t, b: (b, 0, t, 0)),         # both planes, lane-dense
            scratch_shapes=[pltpu.VMEM((N, tile_rows, LANE), jnp.float32)],  # U basis cache
        ),
        compiler_params=pltpu.CompilerParams(
            dimension_semantics=("parallel", "arbitrary")),            # pixel tiles across cores
    )(coef, gx_r, gy_r)

    out = out.reshape(B, 2, hw_pad)[:, :, :hw].reshape(B, 2, H, W)
    return jnp.moveaxis(out, 1, -1)                       # [B, H, W, 2]  (torch.cat(..., dim=3))


def _tps_ref_np(theta, grid_x, grid_y, P_X, P_Y, Li):
    """Pure-numpy reference mirroring the PyTorch apply_transformation."""
    theta = np.asarray(theta, np.float32).reshape(theta.shape[0], 2 * N)
    Q_X, Q_Y = theta[:, :N], theta[:, N:]
    W_X = Q_X @ Li[:N, :N].T
    W_Y = Q_Y @ Li[:N, :N].T
    A_X = Q_X @ Li[N:, :N].T
    A_Y = Q_Y @ Li[N:, :N].T
    d2 = (grid_x[..., None] - P_X) ** 2 + (grid_y[..., None] - P_Y) ** 2
    d2 = np.where(d2 == 0.0, 1.0, d2).astype(np.float32)
    U = d2 * np.log(d2)
    xp = (A_X[:, None, None, 0] + A_X[:, None, None, 1] * grid_x[None]
          + A_X[:, None, None, 2] * grid_y[None] + np.einsum('bn,hwn->bhw', W_X, U))
    yp = (A_Y[:, None, None, 0] + A_Y[:, None, None, 1] * grid_x[None]
          + A_Y[:, None, None, 2] * grid_y[None] + np.einsum('bn,hwn->bhw', W_Y, U))
    return np.stack([xp, yp], axis=-1)


if __name__ == "__main__":
    P_X, P_Y, Li = _make_tps_constants(GRID_SIZE)

    # regular sampling grid (same construction as the module's np.meshgrid of linspaces)
    gx = np.broadcast_to(np.linspace(-1.0, 1.0, OUT_W).astype(np.float32)[None, :],
                         (OUT_H, OUT_W)).copy()
    gy = np.broadcast_to(np.linspace(-1.0, 1.0, OUT_H).astype(np.float32)[:, None],
                         (OUT_H, OUT_W)).copy()

    # deterministic example theta: control points plus a small random perturbation
    B = 2
    key = jax.random.PRNGKey(0)
    base = jnp.concatenate([jnp.asarray(P_X), jnp.asarray(P_Y)])[None, :]
    theta = base + 0.1 * jax.random.normal(key, (B, 2 * N), dtype=jnp.float32)

    out = tps_grid_gen(theta, gx, gy, P_X, P_Y, Li)
    out = jax.block_until_ready(out)

    ref = _tps_ref_np(np.asarray(theta), gx, gy, P_X, P_Y, Li)
    assert out.shape == (B, OUT_H, OUT_W, 2)
    np.testing.assert_allclose(np.asarray(out), ref, rtol=1e-4, atol=1e-4)
    print("KERNEL_OK")
</pallas_src>

<mosaic_0001>
module attributes {stable_mosaic.version = 11 : i64} {
  func.func @kernel(%arg0: i32, %arg1: i32, %arg2: memref<2x24xf32, #tpu.memory_space<smem>>, %arg3: memref<8x128xf32, #tpu.memory_space<vmem>>, %arg4: memref<8x128xf32, #tpu.memory_space<vmem>>, %arg5: memref<1x2x8x128xf32, #tpu.memory_space<vmem>>, %arg6: memref<9x8x128xf32, #tpu.memory_space<vmem>>) attributes {dimension_semantics = [#tpu.dimension_semantics<parallel>, #tpu.dimension_semantics<arbitrary>], iteration_bounds = array<i64: 1, 2>, scalar_prefetch = 0 : i64, scratch_operands = 1 : i64, tpu.core_type = #tpu.core_type<tc>, window_params = [{transform_indices = @transform_0, window_bounds = array<i64: 2, 24>}, {transform_indices = @transform_1, window_bounds = array<i64: 8, 128>}, {transform_indices = @transform_2, window_bounds = array<i64: 8, 128>}, {transform_indices = @transform_3, window_bounds = array<i64: 1, 2, 8, 128>}]} {
    %c0 = arith.constant 0 : index
    %c0_0 = arith.constant 0 : index
    %0 = vector.load %arg3[%c0, %c0_0] : memref<8x128xf32, #tpu.memory_space<vmem>>, vector<8x128xf32>
    %c0_1 = arith.constant 0 : index
    %c0_2 = arith.constant 0 : index
    %1 = vector.load %arg4[%c0_1, %c0_2] : memref<8x128xf32, #tpu.memory_space<vmem>>, vector<8x128xf32>
    %c0_i32 = arith.constant 0 : i32
    %2 = arith.cmpi eq, %arg1, %c0_i32 : i32
    %3 = arith.extui %2 : i1 to i32
    %c0_i32_3 = arith.constant 0 : i32
    %4 = arith.cmpi ne, %3, %c0_i32_3 : i32
    scf.if %4 {
      %cst = arith.constant -1.000000e+00 : f32
      %145 = vector.broadcast %cst : f32 to vector<8x128xf32>
      %146 = arith.subf %0, %145 : vector<8x128xf32>
      %cst_40 = arith.constant -1.000000e+00 : f32
      %147 = vector.broadcast %cst_40 : f32 to vector<8x128xf32>
      %148 = arith.subf %1, %147 : vector<8x128xf32>
      %149 = arith.mulf %146, %146 : vector<8x128xf32>
      %150 = arith.mulf %148, %148 : vector<8x128xf32>
      %151 = arith.addf %149, %150 : vector<8x128xf32>
      %cst_41 = arith.constant 1.000000e-30 : f32
      %152 = vector.broadcast %cst_41 : f32 to vector<8x128xf32>
      %153 = arith.maximumf %151, %152 : vector<8x128xf32>
      %154 = math.log %153 : vector<8x128xf32>
      %155 = arith.mulf %151, %154 : vector<8x128xf32>
      %c0_42 = arith.constant 0 : index
      %c0_43 = arith.constant 0 : index
      %c0_44 = arith.constant 0 : index
      %156 = vector.load %arg6[%c0_42, %c0_43, %c0_44] : memref<9x8x128xf32, #tpu.memory_space<vmem>>, vector<1x8x128xf32>
      %157 = vector.shape_cast %156 : vector<1x8x128xf32> to vector<8x128xf32>
      %158 = vector.shape_cast %155 : vector<8x128xf32> to vector<1x8x128xf32>
      tpu.vector_store %arg6[%c0_42, %c0_43, %c0_44], %158 {strides = array<i32>} : memref<9x8x128xf32, #tpu.memory_space<vmem>>, vector<1x8x128xf32>,
      %cst_45 = arith.constant -1.000000e+00 : f32
      %159 = vector.broadcast %cst_45 : f32 to vector<8x128xf32>
      %160 = arith.subf %0, %159 : vector<8x128xf32>
      %cst_46 = arith.constant 0.000000e+00 : f32
      %161 = vector.broadcast %cst_46 : f32 to vector<8x128xf32>
      %162 = arith.subf %1, %161 : vector<8x128xf32>
      %163 = arith.mulf %160, %160 : vector<8x128xf32>
      %164 = arith.mulf %162, %162 : vector<8x128xf32>
      %165 = arith.addf %163, %164 : vector<8x128xf32>
      %cst_47 = arith.constant 1.000000e-30 : f32
      %166 = vector.broadcast %cst_47 : f32 to vector<8x128xf32>
      %167 = arith.maximumf %165, %166 : vector<8x128xf32>
      %168 = math.log %167 : vector<8x128xf32>
      %169 = arith.mulf %165, %168 : vector<8x128xf32>
      %c1_48 = arith.constant 1 : index
      %c0_49 = arith.constant 0 : index
      %c0_50 = arith.constant 0 : index
      %170 = vector.load %arg6[%c1_48, %c0_49, %c0_50] : memref<9x8x128xf32, #tpu.memory_space<vmem>>, vector<1x8x128xf32>
      %171 = vector.shape_cast %170 : vector<1x8x128xf32> to vector<8x128xf32>
      %172 = vector.shape_cast %169 : vector<8x128xf32> to vector<1x8x128xf32>
      tpu.vector_store %arg6[%c1_48, %c0_49, %c0_50], %172 {strides = array<i32>} : memref<9x8x128xf32, #tpu.memory_space<vmem>>, vector<1x8x128xf32>,
      %cst_51 = arith.constant -1.000000e+00 : f32
      %173 = vector.broadcast %cst_51 : f32 to vector<8x128xf32>
      %174 = arith.subf %0, %173 : vector<8x128xf32>
      %cst_52 = arith.constant 1.000000e+00 : f32
      %175 = vector.broadcast %cst_52 : f32 to vector<8x128xf32>
      %176 = arith.subf %1, %175 : vector<8x128xf32>
      %177 = arith.mulf %174, %174 : vector<8x128xf32>
      %178 = arith.mulf %176, %176 : vector<8x128xf32>
      %179 = arith.addf %177, %178 : vector<8x128xf32>
      %cst_53 = arith.constant 1.000000e-30 : f32
      %180 = vector.broadcast %cst_53 : f32 to vector<8x128xf32>
      %181 = arith.maximumf %179, %180 : vector<8x128xf32>
      %182 = math.log %181 : vector<8x128xf32>
      %183 = arith.mulf %179, %182 : vector<8x128xf32>
      %c2_54 = arith.constant 2 : index
      %c0_55 = arith.constant 0 : index
      %c0_56 = arith.constant 0 : index
      %184 = vector.load %arg6[%c2_54, %c0_55, %c0_56] : memref<9x8x128xf32, #tpu.memory_space<vmem>>, vector<1x8x128xf32>
      %185 = vector.shape_cast %184 : vector<1x8x128xf32> to vector<8x128xf32>
      %186 = vector.shape_cast %183 : vector<8x128xf32> to vector<1x8x128xf32>
      tpu.vector_store %arg6[%c2_54, %c0_55, %c0_56], %186 {strides = array<i32>} : memref<9x8x128xf32, #tpu.memory_space<vmem>>, vector<1x8x128xf32>,
      %cst_57 = arith.constant 0.000000e+00 : f32
      %187 = vector.broadcast %cst_57 : f32 to vector<8x128xf32>
      %188 = arith.subf %0, %187 : vector<8x128xf32>
      %cst_58 = arith.constant -1.000000e+00 : f32
      %189 = vector.broadcast %cst_58 : f32 to vector<8x128xf32>
      %190 = arith.subf %1, %189 : vector<8x128xf32>
      %191 = arith.mulf %188, %188 : vector<8x128xf32>
      %192 = arith.mulf %190, %190 : vector<8x128xf32>
      %193 = arith.addf %191, %192 : vector<8x128xf32>
      %cst_59 = arith.constant 1.000000e-30 : f32
      %194 = vector.broadcast %cst_59 : f32 to vector<8x128xf32>
      %195 = arith.maximumf %193, %194 : vector<8x128xf32>
      %196 = math.log %195 : vector<8x128xf32>
      %197 = arith.mulf %193, %196 : vector<8x128xf32>
      %c3_60 = arith.constant 3 : index
      %c0_61 = arith.constant 0 : index
      %c0_62 = arith.constant 0 : index
      %198 = vector.load %arg6[%c3_60, %c0_61, %c0_62] : memref<9x8x128xf32, #tpu.memory_space<vmem>>, vector<1x8x128xf32>
      %199 = vector.shape_cast %198 : vector<1x8x128xf32> to vector<8x128xf32>
      %200 = vector.shape_cast %197 : vector<8x128xf32> to vector<1x8x128xf32>
      tpu.vector_store %arg6[%c3_60, %c0_61, %c0_62], %200 {strides = array<i32>} : memref<9x8x128xf32, #tpu.memory_space<vmem>>, vector<1x8x128xf32>,
      %cst_63 = arith.constant 0.000000e+00 : f32
      %201 = vector.broadcast %cst_63 : f32 to vector<8x128xf32>
      %202 = arith.subf %0, %201 : vector<8x128xf32>
      %cst_64 = arith.constant 0.000000e+00 : f32
      %203 = vector.broadcast %cst_64 : f32 to vector<8x128xf32>
      %204 = arith.subf %1, %203 : vector<8x128xf32>
      %205 = arith.mulf %202, %202 : vector<8x128xf32>
      %206 = arith.mulf %204, %204 : vector<8x128xf32>
      %207 = arith.addf %205, %206 : vector<8x128xf32>
      %cst_65 = arith.constant 1.000000e-30 : f32
      %208 = vector.broadcast %cst_65 : f32 to vector<8x128xf32>
      %209 = arith.maximumf %207, %208 : vector<8x128xf32>
      %210 = math.log %209 : vector<8x128xf32>
      %211 = arith.mulf %207, %210 : vector<8x128xf32>
      %c4_66 = arith.constant 4 : index
      %c0_67 = arith.constant 0 : index
      %c0_68 = arith.constant 0 : index
      %212 = vector.load %arg6[%c4_66, %c0_67, %c0_68] : memref<9x8x128xf32, #tpu.memory_space<vmem>>, vector<1x8x128xf32>
      %213 = vector.shape_cast %212 : vector<1x8x128xf32> to vector<8x128xf32>
      %214 = vector.shape_cast %211 : vector<8x128xf32> to vector<1x8x128xf32>
      tpu.vector_store %arg6[%c4_66, %c0_67, %c0_68], %214 {strides = array<i32>} : memref<9x8x128xf32, #tpu.memory_space<vmem>>, vector<1x8x128xf32>,
      %cst_69 = arith.constant 0.000000e+00 : f32
      %215 = vector.broadcast %cst_69 : f32 to vector<8x128xf32>
      %216 = arith.subf %0, %215 : vector<8x128xf32>
      %cst_70 = arith.constant 1.000000e+00 : f32
      %217 = vector.broadcast %cst_70 : f32 to vector<8x128xf32>
      %218 = arith.subf %1, %217 : vector<8x128xf32>
      %219 = arith.mulf %216, %216 : vector<8x128xf32>
      %220 = arith.mulf %218, %218 : vector<8x128xf32>
      %221 = arith.addf %219, %220 : vector<8x128xf32>
      %cst_71 = arith.constant 1.000000e-30 : f32
      %222 = vector.broadcast %cst_71 : f32 to vector<8x128xf32>
      %223 = arith.maximumf %221, %222 : vector<8x128xf32>
      %224 = math.log %223 : vector<8x128xf32>
      %225 = arith.mulf %221, %224 : vector<8x128xf32>
      %c5_72 = arith.constant 5 : index
      %c0_73 = arith.constant 0 : index
      %c0_74 = arith.constant 0 : index
      %226 = vector.load %arg6[%c5_72, %c0_73, %c0_74] : memref<9x8x128xf32, #tpu.memory_space<vmem>>, vector<1x8x128xf32>
      %227 = vector.shape_cast %226 : vector<1x8x128xf32> to vector<8x128xf32>
      %228 = vector.shape_cast %225 : vector<8x128xf32> to vector<1x8x128xf32>
      tpu.vector_store %arg6[%c5_72, %c0_73, %c0_74], %228 {strides = array<i32>} : memref<9x8x128xf32, #tpu.memory_space<vmem>>, vector<1x8x128xf32>,
      %cst_75 = arith.constant 1.000000e+00 : f32
      %229 = vector.broadcast %cst_75 : f32 to vector<8x128xf32>
      %230 = arith.subf %0, %229 : vector<8x128xf32>
      %cst_76 = arith.constant -1.000000e+00 : f32
      %231 = vector.broadcast %cst_76 : f32 to vector<8x128xf32>
      %232 = arith.subf %1, %231 : vector<8x128xf32>
      %233 = arith.mulf %230, %230 : vector<8x128xf32>
      %234 = arith.mulf %232, %232 : vector<8x128xf32>
      %235 = arith.addf %233, %234 : vector<8x128xf32>
      %cst_77 = arith.constant 1.000000e-30 : f32
      %236 = vector.broadcast %cst_77 : f32 to vector<8x128xf32>
      %237 = arith.maximumf %235, %236 : vector<8x128xf32>
      %238 = math.log %237 : vector<8x128xf32>
      %239 = arith.mulf %235, %238 : vector<8x128xf32>
      %c6_78 = arith.constant 6 : index
      %c0_79 = arith.constant 0 : index
      %c0_80 = arith.constant 0 : index
      %240 = vector.load %arg6[%c6_78, %c0_79, %c0_80] : memref<9x8x128xf32, #tpu.memory_space<vmem>>, vector<1x8x128xf32>
      %241 = vector.shape_cast %240 : vector<1x8x128xf32> to vector<8x128xf32>
      %242 = vector.shape_cast %239 : vector<8x128xf32> to vector<1x8x128xf32>
      tpu.vector_store %arg6[%c6_78, %c0_79, %c0_80], %242 {strides = array<i32>} : memref<9x8x128xf32, #tpu.memory_space<vmem>>, vector<1x8x128xf32>,
      %cst_81 = arith.constant 1.000000e+00 : f32
      %243 = vector.broadcast %cst_81 : f32 to vector<8x128xf32>
      %244 = arith.subf %0, %243 : vector<8x128xf32>
      %cst_82 = arith.constant 0.000000e+00 : f32
      %245 = vector.broadcast %cst_82 : f32 to vector<8x128xf32>
      %246 = arith.subf %1, %245 : vector<8x128xf32>
      %247 = arith.mulf %244, %244 : vector<8x128xf32>
      %248 = arith.mulf %246, %246 : vector<8x128xf32>
      %249 = arith.addf %247, %248 : vector<8x128xf32>
      %cst_83 = arith.constant 1.000000e-30 : f32
      %250 = vector.broadcast %cst_83 : f32 to vector<8x128xf32>
      %251 = arith.maximumf %249, %250 : vector<8x128xf32>
      %252 = math.log %251 : vector<8x128xf32>
      %253 = arith.mulf %249, %252 : vector<8x128xf32>
      %c7_84 = arith.constant 7 : index
      %c0_85 = arith.constant 0 : index
      %c0_86 = arith.constant 0 : index
      %254 = vector.load %arg6[%c7_84, %c0_85, %c0_86] : memref<9x8x128xf32, #tpu.memory_space<vmem>>, vector<1x8x128xf32>
      %255 = vector.shape_cast %254 : vector<1x8x128xf32> to vector<8x128xf32>
      %256 = vector.shape_cast %253 : vector<8x128xf32> to vector<1x8x128xf32>
      tpu.vector_store %arg6[%c7_84, %c0_85, %c0_86], %256 {strides = array<i32>} : memref<9x8x128xf32, #tpu.memory_space<vmem>>, vector<1x8x128xf32>,
      %cst_87 = arith.constant 1.000000e+00 : f32
      %257 = vector.broadcast %cst_87 : f32 to vector<8x128xf32>
      %258 = arith.subf %0, %257 : vector<8x128xf32>
      %cst_88 = arith.constant 1.000000e+00 : f32
      %259 = vector.broadcast %cst_88 : f32 to vector<8x128xf32>
      %260 = arith.subf %1, %259 : vector<8x128xf32>
      %261 = arith.mulf %258, %258 : vector<8x128xf32>
      %262 = arith.mulf %260, %260 : vector<8x128xf32>
      %263 = arith.addf %261, %262 : vector<8x128xf32>
      %cst_89 = arith.constant 1.000000e-30 : f32
      %264 = vector.broadcast %cst_89 : f32 to vector<8x128xf32>
      %265 = arith.maximumf %263, %264 : vector<8x128xf32>
      %266 = math.log %265 : vector<8x128xf32>
      %267 = arith.mulf %263, %266 : vector<8x128xf32>
      %c8_90 = arith.constant 8 : index
      %c0_91 = arith.constant 0 : index
      %c0_92 = arith.constant 0 : index
      %268 = vector.load %arg6[%c8_90, %c0_91, %c0_92] : memref<9x8x128xf32, #tpu.memory_space<vmem>>, vector<1x8x128xf32>
      %269 = vector.shape_cast %268 : vector<1x8x128xf32> to vector<8x128xf32>
      %270 = vector.shape_cast %267 : vector<8x128xf32> to vector<1x8x128xf32>
      tpu.vector_store %arg6[%c8_90, %c0_91, %c0_92], %270 {strides = array<i32>} : memref<9x8x128xf32, #tpu.memory_space<vmem>>, vector<1x8x128xf32>,
    } else {
    }
    %5 = arith.index_cast %arg1 : i32 to index
    %c0_4 = arith.constant 0 : index
    %6 = memref.load %arg2[%5, %c0_4] : memref<2x24xf32, #tpu.memory_space<smem>>
    %7 = arith.index_cast %arg1 : i32 to index
    %c1 = arith.constant 1 : index
    %8 = memref.load %arg2[%7, %c1] : memref<2x24xf32, #tpu.memory_space<smem>>
    %9 = arith.index_cast %arg1 : i32 to index
    %c2 = arith.constant 2 : index
    %10 = memref.load %arg2[%9, %c2] : memref<2x24xf32, #tpu.memory_space<smem>>
    %11 = arith.index_cast %arg1 : i32 to index
    %c3 = arith.constant 3 : index
    %12 = memref.load %arg2[%11, %c3] : memref<2x24xf32, #tpu.memory_space<smem>>
    %13 = arith.index_cast %arg1 : i32 to index
    %c4 = arith.constant 4 : index
    %14 = memref.load %arg2[%13, %c4] : memref<2x24xf32, #tpu.memory_space<smem>>
    %15 = arith.index_cast %arg1 : i32 to index
    %c5 = arith.constant 5 : index
    %16 = memref.load %arg2[%15, %c5] : memref<2x24xf32, #tpu.memory_space<smem>>
    %17 = arith.index_cast %arg1 : i32 to index
    %c6 = arith.constant 6 : index
    %18 = memref.load %arg2[%17, %c6] : memref<2x24xf32, #tpu.memory_space<smem>>
    %19 = arith.index_cast %arg1 : i32 to index
    %c7 = arith.constant 7 : index
    %20 = memref.load %arg2[%19, %c7] : memref<2x24xf32, #tpu.memory_space<smem>>
    %21 = arith.index_cast %arg1 : i32 to index
    %c8 = arith.constant 8 : index
    %22 = memref.load %arg2[%21, %c8] : memref<2x24xf32, #tpu.memory_space<smem>>
    %23 = arith.index_cast %arg1 : i32 to index
    %c9 = arith.constant 9 : index
    %24 = memref.load %arg2[%23, %c9] : memref<2x24xf32, #tpu.memory_space<smem>>
    %25 = arith.index_cast %arg1 : i32 to index
    %c10 = arith.constant 10 : index
    %26 = memref.load %arg2[%25, %c10] : memref<2x24xf32, #tpu.memory_space<smem>>
    %27 = arith.index_cast %arg1 : i32 to index
    %c11 = arith.constant 11 : index
    %28 = memref.load %arg2[%27, %c11] : memref<2x24xf32, #tpu.memory_space<smem>>
    %29 = arith.index_cast %arg1 : i32 to index
    %c12 = arith.constant 12 : index
    %30 = memref.load %arg2[%29, %c12] : memref<2x24xf32, #tpu.memory_space<smem>>
    %31 = arith.index_cast %arg1 : i32 to index
    %c13 = arith.constant 13 : index
    %32 = memref.load %arg2[%31, %c13] : memref<2x24xf32, #tpu.memory_space<smem>>
    %33 = arith.index_cast %arg1 : i32 to index
    %c14 = arith.constant 14 : index
    %34 = memref.load %arg2[%33, %c14] : memref<2x24xf32, #tpu.memory_space<smem>>
    %35 = arith.index_cast %arg1 : i32 to index
    %c15 = arith.constant 15 : index
    %36 = memref.load %arg2[%35, %c15] : memref<2x24xf32, #tpu.memory_space<smem>>
    %37 = arith.index_cast %arg1 : i32 to index
    %c16 = arith.constant 16 : index
    %38 = memref.load %arg2[%37, %c16] : memref<2x24xf32, #tpu.memory_space<smem>>
    %39 = arith.index_cast %arg1 : i32 to index
    %c17 = arith.constant 17 : index
    %40 = memref.load %arg2[%39, %c17] : memref<2x24xf32, #tpu.memory_space<smem>>
    %41 = arith.index_cast %arg1 : i32 to index
    %c18 = arith.constant 18 : index
    %42 = memref.load %arg2[%41, %c18] : memref<2x24xf32, #tpu.memory_space<smem>>
    %43 = arith.index_cast %arg1 : i32 to index
    %c19 = arith.constant 19 : index
    %44 = memref.load %arg2[%43, %c19] : memref<2x24xf32, #tpu.memory_space<smem>>
    %45 = arith.index_cast %arg1 : i32 to index
    %c20 = arith.constant 20 : index
    %46 = memref.load %arg2[%45, %c20] : memref<2x24xf32, #tpu.memory_space<smem>>
    %47 = arith.index_cast %arg1 : i32 to index
    %c21 = arith.constant 21 : index
    %48 = memref.load %arg2[%47, %c21] : memref<2x24xf32, #tpu.memory_space<smem>>
    %49 = arith.index_cast %arg1 : i32 to index
    %c22 = arith.constant 22 : index
    %50 = memref.load %arg2[%49, %c22] : memref<2x24xf32, #tpu.memory_space<smem>>
    %51 = arith.index_cast %arg1 : i32 to index
    %c23 = arith.constant 23 : index
    %52 = memref.load %arg2[%51, %c23] : memref<2x24xf32, #tpu.memory_space<smem>>
    %53 = vector.broadcast %26 : f32 to vector<8x128xf32>
    %54 = arith.mulf %53, %0 : vector<8x128xf32>
    %55 = vector.broadcast %24 : f32 to vector<8x128xf32>
    %56 = arith.addf %55, %54 : vector<8x128xf32>
    %57 = vector.broadcast %28 : f32 to vector<8x128xf32>
    %58 = arith.mulf %57, %1 : vector<8x128xf32>
    %59 = arith.addf %56, %58 : vector<8x128xf32>
    %60 = vector.broadcast %50 : f32 to vector<8x128xf32>
    %61 = arith.mulf %60, %0 : vector<8x128xf32>
    %62 = vector.broadcast %48 : f32 to vector<8x128xf32>
    %63 = arith.addf %62, %61 : vector<8x128xf32>
    %64 = vector.broadcast %52 : f32 to vector<8x128xf32>
    %65 = arith.mulf %64, %1 : vector<8x128xf32>
    %66 = arith.addf %63, %65 : vector<8x128xf32>
    %c0_5 = arith.constant 0 : index
    %c0_6 = arith.constant 0 : index
    %c0_7 = arith.constant 0 : index
    %67 = vector.load %arg6[%c0_5, %c0_6, %c0_7] : memref<9x8x128xf32, #tpu.memory_space<vmem>>, vector<1x8x128xf32>
    %68 = vector.shape_cast %67 : vector<1x8x128xf32> to vector<8x128xf32>
    %69 = vector.broadcast %6 : f32 to vector<8x128xf32>
    %70 = arith.mulf %69, %68 : vector<8x128xf32>
    %71 = arith.addf %59, %70 : vector<8x128xf32>
    %72 = vector.broadcast %30 : f32 to vector<8x128xf32>
    %73 = arith.mulf %72, %68 : vector<8x128xf32>
    %74 = arith.addf %66, %73 : vector<8x128xf32>
    %c1_8 = arith.constant 1 : index
    %c0_9 = arith.constant 0 : index
    %c0_10 = arith.constant 0 : index
    %75 = vector.load %arg6[%c1_8, %c0_9, %c0_10] : memref<9x8x128xf32, #tpu.memory_space<vmem>>, vector<1x8x128xf32>
    %76 = vector.shape_cast %75 : vector<1x8x128xf32> to vector<8x128xf32>
    %77 = vector.broadcast %8 : f32 to vector<8x128xf32>
    %78 = arith.mulf %77, %76 : vector<8x128xf32>
    %79 = arith.addf %71, %78 : vector<8x128xf32>
    %80 = vector.broadcast %32 : f32 to vector<8x128xf32>
    %81 = arith.mulf %80, %76 : vector<8x128xf32>
    %82 = arith.addf %74, %81 : vector<8x128xf32>
    %c2_11 = arith.constant 2 : index
    %c0_12 = arith.constant 0 : index
    %c0_13 = arith.constant 0 : index
    %83 = vector.load %arg6[%c2_11, %c0_12, %c0_13] : memref<9x8x128xf32, #tpu.memory_space<vmem>>, vector<1x8x128xf32>
    %84 = vector.shape_cast %83 : vector<1x8x128xf32> to vector<8x128xf32>
    %85 = vector.broadcast %10 : f32 to vector<8x128xf32>
    %86 = arith.mulf %85, %84 : vector<8x128xf32>
    %87 = arith.addf %79, %86 : vector<8x128xf32>
    %88 = vector.broadcast %34 : f32 to vector<8x128xf32>
    %89 = arith.mulf %88, %84 : vector<8x128xf32>
    %90 = arith.addf %82, %89 : vector<8x128xf32>
    %c3_14 = arith.constant 3 : index
    %c0_15 = arith.constant 0 : index
    %c0_16 = arith.constant 0 : index
    %91 = vector.load %arg6[%c3_14, %c0_15, %c0_16] : memref<9x8x128xf32, #tpu.memory_space<vmem>>, vector<1x8x128xf32>
    %92 = vector.shape_cast %91 : vector<1x8x128xf32> to vector<8x128xf32>
    %93 = vector.broadcast %12 : f32 to vector<8x128xf32>
    %94 = arith.mulf %93, %92 : vector<8x128xf32>
    %95 = arith.addf %87, %94 : vector<8x128xf32>
    %96 = vector.broadcast %36 : f32 to vector<8x128xf32>
    %97 = arith.mulf %96, %92 : vector<8x128xf32>
    %98 = arith.addf %90, %97 : vector<8x128xf32>
    %c4_17 = arith.constant 4 : index
    %c0_18 = arith.constant 0 : index
    %c0_19 = arith.constant 0 : index
    %99 = vector.load %arg6[%c4_17, %c0_18, %c0_19] : memref<9x8x128xf32, #tpu.memory_space<vmem>>, vector<1x8x128xf32>
    %100 = vector.shape_cast %99 : vector<1x8x128xf32> to vector<8x128xf32>
    %101 = vector.broadcast %14 : f32 to vector<8x128xf32>
    %102 = arith.mulf %101, %100 : vector<8x128xf32>
    %103 = arith.addf %95, %102 : vector<8x128xf32>
    %104 = vector.broadcast %38 : f32 to vector<8x128xf32>
    %105 = arith.mulf %104, %100 : vector<8x128xf32>
    %106 = arith.addf %98, %105 : vector<8x128xf32>
    %c5_20 = arith.constant 5 : index
    %c0_21 = arith.constant 0 : index
    %c0_22 = arith.constant 0 : index
    %107 = vector.load %arg6[%c5_20, %c0_21, %c0_22] : memref<9x8x128xf32, #tpu.memory_space<vmem>>, vector<1x8x128xf32>
    %108 = vector.shape_cast %107 : vector<1x8x128xf32> to vector<8x128xf32>
    %109 = vector.broadcast %16 : f32 to vector<8x128xf32>
    %110 = arith.mulf %109, %108 : vector<8x128xf32>
    %111 = arith.addf %103, %110 : vector<8x128xf32>
    %112 = vector.broadcast %40 : f32 to vector<8x128xf32>
    %113 = arith.mulf %112, %108 : vector<8x128xf32>
    %114 = arith.addf %106, %113 : vector<8x128xf32>
    %c6_23 = arith.constant 6 : index
    %c0_24 = arith.constant 0 : index
    %c0_25 = arith.constant 0 : index
    %115 = vector.load %arg6[%c6_23, %c0_24, %c0_25] : memref<9x8x128xf32, #tpu.memory_space<vmem>>, vector<1x8x128xf32>
    %116 = vector.shape_cast %115 : vector<1x8x128xf32> to vector<8x128xf32>
    %117 = vector.broadcast %18 : f32 to vector<8x128xf32>
    %118 = arith.mulf %117, %116 : vector<8x128xf32>
    %119 = arith.addf %111, %118 : vector<8x128xf32>
    %120 = vector.broadcast %42 : f32 to vector<8x128xf32>
    %121 = arith.mulf %120, %116 : vector<8x128xf32>
    %122 = arith.addf %114, %121 : vector<8x128xf32>
    %c7_26 = arith.constant 7 : index
    %c0_27 = arith.constant 0 : index
    %c0_28 = arith.constant 0 : index
    %123 = vector.load %arg6[%c7_26, %c0_27, %c0_28] : memref<9x8x128xf32, #tpu.memory_space<vmem>>, vector<1x8x128xf32>
    %124 = vector.shape_cast %123 : vector<1x8x128xf32> to vector<8x128xf32>
    %125 = vector.broadcast %20 : f32 to vector<8x128xf32>
    %126 = arith.mulf %125, %124 : vector<8x128xf32>
    %127 = arith.addf %119, %126 : vector<8x128xf32>
    %128 = vector.broadcast %44 : f32 to vector<8x128xf32>
    %129 = arith.mulf %128, %124 : vector<8x128xf32>
    %130 = arith.addf %122, %129 : vector<8x128xf32>
    %c8_29 = arith.constant 8 : index
    %c0_30 = arith.constant 0 : index
    %c0_31 = arith.constant 0 : index
    %131 = vector.load %arg6[%c8_29, %c0_30, %c0_31] : memref<9x8x128xf32, #tpu.memory_space<vmem>>, vector<1x8x128xf32>
    %132 = vector.shape_cast %131 : vector<1x8x128xf32> to vector<8x128xf32>
    %133 = vector.broadcast %22 : f32 to vector<8x128xf32>
    %134 = arith.mulf %133, %132 : vector<8x128xf32>
    %135 = arith.addf %127, %134 : vector<8x128xf32>
    %136 = vector.broadcast %46 : f32 to vector<8x128xf32>
    %137 = arith.mulf %136, %132 : vector<8x128xf32>
    %138 = arith.addf %130, %137 : vector<8x128xf32>
    %c0_32 = arith.constant 0 : index
    %c0_33 = arith.constant 0 : index
    %c0_34 = arith.constant 0 : index
    %c0_35 = arith.constant 0 : index
    %139 = vector.load %arg5[%c0_32, %c0_33, %c0_34, %c0_35] : memref<1x2x8x128xf32, #tpu.memory_space<vmem>>, vector<1x1x8x128xf32>
    %140 = vector.shape_cast %139 : vector<1x1x8x128xf32> to vector<8x128xf32>
    %141 = vector.shape_cast %135 : vector<8x128xf32> to vector<1x1x8x128xf32>
    tpu.vector_store %arg5[%c0_32, %c0_33, %c0_34, %c0_35], %141 {strides = array<i32>} : memref<1x2x8x128xf32, #tpu.memory_space<vmem>>, vector<1x1x8x128xf32>,
    %c0_36 = arith.constant 0 : index
    %c1_37 = arith.constant 1 : index
    %c0_38 = arith.constant 0 : index
    %c0_39 = arith.constant 0 : index
    %142 = vector.load %arg5[%c0_36, %c1_37, %c0_38, %c0_39] : memref<1x2x8x128xf32, #tpu.memory_space<vmem>>, vector<1x1x8x128xf32>
    %143 = vector.shape_cast %142 : vector<1x1x8x128xf32> to vector<8x128xf32>
    %144 = vector.shape_cast %138 : vector<8x128xf32> to vector<1x1x8x128xf32>
    tpu.vector_store %arg5[%c0_36, %c1_37, %c0_38, %c0_39], %144 {strides = array<i32>} : memref<1x2x8x128xf32, #tpu.memory_space<vmem>>, vector<1x1x8x128xf32>,
    return
  }
  func.func @transform_0(%arg0: i32, %arg1: i32) -> (i32, i32) {
    %c0_i32 = arith.constant 0 : i32
    %c0_i32_0 = arith.constant 0 : i32
    %c0_i32_1 = arith.constant 0 : i32
    return %c0_i32, %c0_i32_0 : i32, i32
  }
  func.func @transform_1(%arg0: i32, %arg1: i32) -> (i32, i32) {
    %c0_i32 = arith.constant 0 : i32
    %c0_i32_0 = arith.constant 0 : i32
    return %arg0, %c0_i32 : i32, i32
  }
  func.func @transform_2(%arg0: i32, %arg1: i32) -> (i32, i32) {
    %c0_i32 = arith.constant 0 : i32
    %c0_i32_0 = arith.constant 0 : i32
    return %arg0, %c0_i32 : i32, i32
  }
  func.func @transform_3(%arg0: i32, %arg1: i32) -> (i32, i32, i32, i32) {
    %c0_i32 = arith.constant 0 : i32
    %c0_i32_0 = arith.constant 0 : i32
    %c0_i32_1 = arith.constant 0 : i32
    return %arg1, %c0_i32, %arg0, %c0_i32_0 : i32, i32, i32, i32
  }
}

</mosaic_0001>

<llo_original>
// kernel: tpu_custom_call.1
$region0: #{tpu_custom_call.1}
  #allocation0 [shape = 'u32[]', space=smem, size = 0x4, offset = 0x4, fixed_abs, tag = 'smem constant byte address 0x4 - core index']
  #allocation1 [shape = 'u32[72,128]{1,0:T(1,128)}', space=vmem, size = 0x9000, scoped, tag = 'internal scratch']
  #allocation2 [shape = 'f32[9,8,128]{2,1,0:T(8,128)}', space=vmem, size = 0x9000, scoped, tag = 'scratch operand']
  %s0 = inlined_call_operand.hbm [shape: f32[2,24], index: 0, kind: input, shape index: {}]
  %s1 = inlined_call_operand.hbm [shape: f32[8,128], index: 1, kind: input, shape index: {}]
  %s2 = inlined_call_operand.hbm [shape: f32[8,128], index: 2, kind: input, shape index: {}]
  %s3 = inlined_call_operand.hbm [shape: f32[2,2,8,128], index: 3, kind: output, shape index: {}]
  %s4 = sld [smem:[#allocation0]]
  $region61: #{tpu_custom_call.1} parent=0
    _
  %s6 = ssub.s32 1, %s4
  %s7 = scalar_select 0, %s6, %s4
  $region1: #{tpu_custom_call.1} parent=0
    #allocation3 [shape = 'u8[1024]{0}', space=smem, size = 0x400, scoped, tag = 'input window, operand 0, single buffered']
    #allocation4 [shape = 's32[2]{0}', space=sflag, size = 0x8, scoped, tag = 'scoped memory for tpu_custom_call.1']
    #allocation5 [shape = 's32[2]{0}', space=sflag, size = 0x8, scoped, tag = 'scoped memory for tpu_custom_call.1']
    #allocation6 [shape = 's32[2]{0}', space=sflag, size = 0x8, scoped, tag = 'scoped memory for tpu_custom_call.1']
    #allocation7 [shape = 'u8[4096]{0}', space=vmem, size = 0x1000, scoped, tag = 'input window, operand 1, single buffered']
    #allocation8 [shape = 'u8[4096]{0}', space=vmem, size = 0x1000, scoped, tag = 'input window, operand 2, single buffered']
    #allocation9 [shape = 's32[1]{0}', space=sflag, size = 0x4, scoped, tag = 'scoped memory for tpu_custom_call.1']
    #allocation10 [shape = 'u8[16384]{0}', space=vmem, size = 0x4000, scoped, tag = 'output window, operand 0']
    %8 = vsyncpa [#allocation6], 0
    %9 = vsyncpa [#allocation4], 0
    %10 = vsyncpa [#allocation9], 0
    %11 = vsyncpa [#allocation5], 0
    %s12 = scalar_lea.sflag [#allocation5], 1
    %13 = vsyncpa %s12, 0
    loop: start=0, step=1, limit=4
    $region2: #{tpu_custom_call.1} parent=1 // loop_pre_header
      _
    $region3: #{tpu_custom_call.1} parent=1 // loop_header
      %s15 = sphi 0, %s19
      %p16 = scmp.ge.s32.totalorder %s15, 4
      %s22 = sphi 0, %s34
      %s23 = sphi 0, %s30
      %s24 = sphi 0, %s22
      %s25 = sphi 0, %s23
      %s26 = sphi 0, %s24
      %s27 = sphi 0, %s25
      %s35 = sphi 0, %s35
      %s37 = sphi 0, %s35
      %s38 = sphi 0, %s37
      %s52 = sphi 0, %s38
      %s58 = sphi 0, %s60
      %s61 = sphi 0, %s58
      %s62 = sphi 0, %s61
      %s78 = sphi 0, %s62
      %s84 = sphi 0, %s86
      %s87 = sphi 0, %s84
      %s88 = sphi 0, %s87
      %s104 = sphi 0, %s88
      %s112 = sphi 0, %s114
      %s115 = sphi 0, %s112
      %s116 = sphi 0, %s115
      %s132 = sphi 0, %s116
    $region4: #{tpu_custom_call.1} parent=1 // loop_header_branch
      %18 = sbr.rel (%p16) target = $region8
    $region5: #{tpu_custom_call.1} parent=1 // loop_body
      %s20 = ssub.s32 %s15, 1
      %s21 = ssub.s32 %s15, 2
      %s28 = sadd.s32 1, %s23
      %p29 = scmp.ge.s32.totalorder %s28, 2
      %s30 = scalar_select %p29, 0, %s28
      %s31 = sadd.s32 1, %s22
      %s32 = scalar_select %p29, %s31, %s22
      %p33 = scmp.ge.s32.totalorder %s32, 1
      %s34 = scalar_select %p33, 0, %s32
      %s36 = sadd.s32 %s35, 1
      %p39 = scmp.eq.s32.totalorder %s15, 1
      %p40 = scmp.ne.s32.totalorder %s35, %s37
      %p41 = scmp.eq.s32.totalorder %s15, 0
      %p42 = por %p40, %p41
      %p43 = scmp.ne.s32.totalorder %s35, %s37
      %p44 = scmp.eq.s32.totalorder %s20, 1
      %p45 = por %p43, %p44
      %p46 = scmp.ne.s32.totalorder %s37, %s38
      %p47 = scmp.eq.s32.totalorder %s20, 0
      %p48 = por %p46, %p47
      %p49 = scmp.ne.s32.totalorder %s37, %s38
      %p50 = scmp.eq.s32.totalorder %s21, 1
      %p51 = por %p49, %p50
      %p53 = scmp.ne.s32.totalorder %s38, %s52
      %p54 = scmp.eq.s32.totalorder %s21, 0
      %p55 = por %p53, %p54
      %s56 = ssub.s32 %s22, %s34
      %p57 = scmp.eq.s32.totalorder %s56, 0
      %s59 = sadd.s32 %s58, 1
      %s60 = scalar_select %p57, %s58, %s59
      %p63 = pneg %p57
      %p64 = scmp.eq.s32.totalorder %s15, 1
      %p65 = por %p63, %p64
      %p66 = scmp.ne.s32.totalorder %s58, %s61
      %p67 = scmp.eq.s32.totalorder %s15, 0
      %p68 = por %p66, %p67
      %p69 = scmp.ne.s32.totalorder %s58, %s61
      %p70 = scmp.eq.s32.totalorder %s20, 1
      %p71 = por %p69, %p70
      %p72 = scmp.ne.s32.totalorder %s61, %s62
      %p73 = scmp.eq.s32.totalorder %s20, 0
      %p74 = por %p72, %p73
      %p75 = scmp.ne.s32.totalorder %s61, %s62
      %p76 = scmp.eq.s32.totalorder %s21, 1
      %p77 = por %p75, %p76
      %p79 = scmp.ne.s32.totalorder %s62, %s78
      %p80 = scmp.eq.s32.totalorder %s21, 0
      %p81 = por %p79, %p80
      %s82 = ssub.s32 %s22, %s34
      %p83 = scmp.eq.s32.totalorder %s82, 0
      %s85 = sadd.s32 %s84, 1
      %s86 = scalar_select %p83, %s84, %s85
      %p89 = pneg %p83
      %p90 = scmp.eq.s32.totalorder %s15, 1
      %p91 = por %p89, %p90
      %p92 = scmp.ne.s32.totalorder %s84, %s87
      %p93 = scmp.eq.s32.totalorder %s15, 0
      %p94 = por %p92, %p93
      %p95 = scmp.ne.s32.totalorder %s84, %s87
      %p96 = scmp.eq.s32.totalorder %s20, 1
      %p97 = por %p95, %p96
      %p98 = scmp.ne.s32.totalorder %s87, %s88
      %p99 = scmp.eq.s32.totalorder %s20, 0
      %p100 = por %p98, %p99
      %p101 = scmp.ne.s32.totalorder %s87, %s88
      %p102 = scmp.eq.s32.totalorder %s21, 1
      %p103 = por %p101, %p102
      %p105 = scmp.ne.s32.totalorder %s88, %s104
      %p106 = scmp.eq.s32.totalorder %s21, 0
      %p107 = por %p105, %p106
      %s108 = ssub.s32 %s23, %s30
      %s109 = ssub.s32 %s22, %s34
      %s110 = sor.u32 %s108, %s109
      %p111 = scmp.eq.s32.totalorder %s110, 0
      %s113 = sadd.s32 %s112, 1
      %s114 = scalar_select %p111, %s112, %s113
      %p117 = pneg %p111
      %p118 = scmp.eq.s32.totalorder %s15, 1
      %p119 = por %p117, %p118
      %p120 = scmp.ne.s32.totalorder %s112, %s115
      %p121 = scmp.eq.s32.totalorder %s15, 0
      %p122 = por %p120, %p121
      %p123 = scmp.ne.s32.totalorder %s112, %s115
      %p124 = scmp.eq.s32.totalorder %s20, 1
      %p125 = por %p123, %p124
      %p126 = scmp.ne.s32.totalorder %s115, %s116
      %p127 = scmp.eq.s32.totalorder %s20, 0
      %p128 = por %p126, %p127
      %p129 = scmp.ne.s32.totalorder %s115, %s116
      %p130 = scmp.eq.s32.totalorder %s21, 1
      %p131 = por %p129, %p130
      %p133 = scmp.ne.s32.totalorder %s116, %s132
      %p134 = scmp.eq.s32.totalorder %s21, 0
      %p135 = por %p133, %p134
      %p136 = scmp.le.s32.totalorder 1, %s15
      %p137 = scmp.lt.s32.totalorder %s15, 3
      %p138 = pnand %p136, %p137
      %p139 = pneg %p138
      // Predicated region
      $region9: #{tpu_custom_call.1} parent=5 // pred_check
        _
      $region10: #{tpu_custom_call.1} parent=5 // pred_check_branch
        %141 = sbr.rel (%p138) target = $region12
      $region11: #{tpu_custom_call.1} parent=5 // pred_region
        %s142 = ssub.s32 %s15, 1
        // Predicated region
        $region13: #{tpu_custom_call.1} parent=11 // pred_check
          %p143 = pneg %p48
        $region14: #{tpu_custom_call.1} parent=11 // pred_check_branch
          %145 = sbr.rel (%p143) target = $region16
        $region15: #{tpu_custom_call.1} parent=11 // pred_region
          %147 = vsyncadd [#allocation6], 0
          %s149 = sshll.u32 %s0, 4
          %s150 = int_to_ptr.hbm [resolvable:$true] %s149
          %152 = dma.hbm_to_smem %s150, 32, [#allocation3], [#allocation6]
        $region16: #{tpu_custom_call.1} parent=11 // pred_fallthru
          _
        // Predicated region
        $region17: #{tpu_custom_call.1} parent=11 // pred_check
          %p153 = pneg %p74
        $region18: #{tpu_custom_call.1} parent=11 // pred_check_branch
          %155 = sbr.rel (%p153) target = $region20
        $region19: #{tpu_custom_call.1} parent=11 // pred_region
          %157 = vsyncadd [#allocation4], 0
          %s158 = smul.addr %s24, 8
          %s159 = scalar_lea.hbm %s1, %s158
          %s161 = sshll.u32 %s159, 4
          %s162 = int_to_ptr.hbm [resolvable:$true] %s161
          %s163 = sshll.u32 [#allocation7], 4
          %s164 = int_to_ptr.vmem [resolvable:$true] %s163
          %166 = dma.hbm_to_vmem [thread:$0]  %s162, 128, %s164, [#allocation4]
        $region20: #{tpu_custom_call.1} parent=11 // pred_fallthru
          _
        // Predicated region
        $region21: #{tpu_custom_call.1} parent=11 // pred_check
          %p167 = pneg %p100
        $region22: #{tpu_custom_call.1} parent=11 // pred_check_branch
          %169 = sbr.rel (%p167) target = $region24
        $region23: #{tpu_custom_call.1} parent=11 // pred_region
          %171 = vsyncadd [#allocation9], 0
          %s172 = smul.addr %s24, 8
          %s173 = scalar_lea.hbm %s2, %s172
          %s175 = sshll.u32 %s173, 4
          %s176 = int_to_ptr.hbm [resolvable:$true] %s175
          %s177 = sshll.u32 [#allocation8], 4
          %s178 = int_to_ptr.vmem [resolvable:$true] %s177
          %180 = dma.hbm_to_vmem [thread:$0]  %s176, 128, %s178, [#allocation9]
        $region24: #{tpu_custom_call.1} parent=11 // pred_fallthru
          _
      $region12: #{tpu_custom_call.1} parent=5 // pred_fallthru
        _
      %p181 = scmp.lt.s32.totalorder %s15, 2
      // Predicated region
      $region25: #{tpu_custom_call.1} parent=5 // pred_check
        %p182 = pneg %p181
      $region26: #{tpu_custom_call.1} parent=5 // pred_check_branch
        %184 = sbr.rel (%p182) target = $region28
      $region27: #{tpu_custom_call.1} parent=5 // pred_region
        _
      $region28: #{tpu_custom_call.1} parent=5 // pred_fallthru
        _
      %p185 = scmp.le.s32.totalorder 1, %s15
      %p186 = scmp.lt.s32.totalorder %s15, 3
      %p187 = pnand %p185, %p186
      %p188 = pneg %p187
      // Predicated region
      $region29: #{tpu_custom_call.1} parent=5 // pred_check
        _
      $region30: #{tpu_custom_call.1} parent=5 // pred_check_branch
        %190 = sbr.rel (%p187) target = $region32
      $region31: #{tpu_custom_call.1} parent=5 // pred_region
        %s191 = ssub.s32 %s15, 1
        // Predicated region
        $region33: #{tpu_custom_call.1} parent=31 // pred_check
          %p192 = pneg %p48
        $region34: #{tpu_custom_call.1} parent=31 // pred_check_branch
          %194 = sbr.rel (%p192) target = $region36
        $region35: #{tpu_custom_call.1} parent=31 // pred_region
          %196 = dma.done [#allocation6], 32
        $region36: #{tpu_custom_call.1} parent=31 // pred_fallthru
          _
        // Predicated region
        $region37: #{tpu_custom_call.1} parent=31 // pred_check
          %p197 = pneg %p74
        $region38: #{tpu_custom_call.1} parent=31 // pred_check_branch
          %199 = sbr.rel (%p197) target = $region40
        $region39: #{tpu_custom_call.1} parent=31 // pred_region
          %201 = dma.done [#allocation4], 128
        $region40: #{tpu_custom_call.1} parent=31 // pred_fallthru
          _
        // Predicated region
        $region41: #{tpu_custom_call.1} parent=31 // pred_check
          %p202 = pneg %p100
        $region42: #{tpu_custom_call.1} parent=31 // pred_check_branch
          %204 = sbr.rel (%p202) target = $region44
        $region43: #{tpu_custom_call.1} parent=31 // pred_region
          %206 = dma.done [#allocation9], 128
        $region44: #{tpu_custom_call.1} parent=31 // pred_fallthru
          _
        %207 = sfence
        %p208 = pneg %p48
        %p209 = pneg %p45
        %p210 = pneg %p74
        %p211 = pneg %p71
        %p212 = pneg %p100
        %p213 = pneg %p97
        %p214 = pneg %p128
        %p215 = pneg %p125
        %s216 = sand.u32 %s115, 1
        %s217 = scalar_lea.sflag [#allocation5], %s216
        %s218 = sand.u32 %s115, 1
        %s219 = smul.addr %s218, 16
        %s220 = scalar_lea.vmem [#allocation10], %s219
        %v221 = vld [vmem:[#allocation7] sm:$0xff]
        %v222 = vld [vmem:[#allocation8] sm:$0xff]
        %p223 = scmp.eq.s32.totalorder %s25, 0
        // Predicated region
        $region45: #{tpu_custom_call.1} parent=31 // pred_check
          %p224 = pneg %p223
        $region46: #{tpu_custom_call.1} parent=31 // pred_check_branch
          %226 = sbr.rel (%p224) target = $region48
        $region47: #{tpu_custom_call.1} parent=31 // pred_region
          %v227 = vsub.f32 %v221, -1.0
          %v228 = vsub.f32 %v222, -1.0
          %v229 = vmul.f32 %v227, %v227
          %v230 = vmul.f32 %v228, %v228
          %v231 = vadd.f32 %v229, %v230
          %v232 = vmax.f32 %v231, 1e-30
          %v233 = vlog2.pop %v232
          %v234 = vmul.f32 %v233, 0.6931472
          %v235 = vmul.f32 %v231, %v234
          %236 = vst [vmem:[#allocation2] sm:$0xff] %v235
          %v237 = vmul.f32 %v222, %v222
          %v238 = vadd.f32 %v229, %v237
          %v239 = vmax.f32 %v238, 1e-30
          %v240 = vlog2.pop %v239
          %v241 = vmul.f32 %v240, 0.6931472
          %v242 = vmul.f32 %v238, %v241
          %s243 = scalar_lea.vmem [#allocation2], 8
          %244 = vst [vmem:[%s243] sm:$0xff] %v242
          %v245 = vsub.f32 %v222, 1.0
          %v246 = vmul.f32 %v245, %v245
          %v247 = vadd.f32 %v229, %v246
          %v248 = vmax.f32 %v247, 1e-30
          %v249 = vlog2.pop %v248
          %v250 = vmul.f32 %v249, 0.6931472
          %v251 = vmul.f32 %v247, %v250
          %s252 = scalar_lea.vmem [#allocation2], 16
          %253 = vst [vmem:[%s252] sm:$0xff] %v251
          %v254 = vmul.f32 %v221, %v221
          %v255 = vadd.f32 %v254, %v230
          %v256 = vmax.f32 %v255, 1e-30
          %v257 = vlog2.pop %v256
          %v258 = vmul.f32 %v257, 0.6931472
          %v259 = vmul.f32 %v255, %v258
          %s260 = scalar_lea.vmem [#allocation2], 24
          %261 = vst [vmem:[%s260] sm:$0xff] %v259
          %v262 = vadd.f32 %v254, %v237
          %v263 = vmax.f32 %v262, 1e-30
          %v264 = vlog2.pop %v263
          %v265 = vmul.f32 %v264, 0.6931472
          %v266 = vmul.f32 %v262, %v265
          %s267 = scalar_lea.vmem [#allocation2], 32
          %268 = vst [vmem:[%s267] sm:$0xff] %v266
          %v269 = vadd.f32 %v254, %v246
          %v270 = vmax.f32 %v269, 1e-30
          %v271 = vlog2.pop %v270
          %v272 = vmul.f32 %v271, 0.6931472
          %v273 = vmul.f32 %v269, %v272
          %s274 = scalar_lea.vmem [#allocation2], 40
          %275 = vst [vmem:[%s274] sm:$0xff] %v273
          %v276 = vsub.f32 %v221, 1.0
          %v277 = vmul.f32 %v276, %v276
          %v278 = vadd.f32 %v277, %v230
          %v279 = vmax.f32 %v278, 1e-30
          %v280 = vlog2.pop %v279
          %v281 = vmul.f32 %v280, 0.6931472
          %v282 = vmul.f32 %v278, %v281
          %s283 = scalar_lea.vmem [#allocation2], 48
          %284 = vst [vmem:[%s283] sm:$0xff] %v282
          %v285 = vadd.f32 %v277, %v237
          %v286 = vmax.f32 %v285, 1e-30
          %v287 = vlog2.pop %v286
          %v288 = vmul.f32 %v287, 0.6931472
          %v289 = vmul.f32 %v285, %v288
          %s290 = scalar_lea.vmem [#allocation2], 56
          %291 = vst [vmem:[%s290] sm:$0xff] %v289
          %v292 = vadd.f32 %v277, %v246
          %v293 = vmax.f32 %v292, 1e-30
          %v294 = vlog2.pop %v293
          %v295 = vmul.f32 %v294, 0.6931472
          %v296 = vmul.f32 %v292, %v295
          %s297 = scalar_lea.vmem [#allocation2], 64
          %298 = vst [vmem:[%s297] sm:$0xff] %v296
        $region48: #{tpu_custom_call.1} parent=31 // pred_fallthru
          _
        %s299 = smul.u32 %s25, 128
        %s300 = sld [smem:[#allocation3 + %s299]]
        %s301 = sadd.s32 %s299, 1
        %s302 = sld [smem:[#allocation3 + %s301]]
        %s303 = sadd.s32 %s299, 2
        %s304 = sld [smem:[#allocation3 + %s303]]
        %s305 = sadd.s32 %s299, 3
        %s306 = sld [smem:[#allocation3 + %s305]]
        %s307 = sadd.s32 %s299, 4
        %s308 = sld [smem:[#allocation3 + %s307]]
        %s309 = sadd.s32 %s299, 5
        %s310 = sld [smem:[#allocation3 + %s309]]
        %s311 = sadd.s32 %s299, 6
        %s312 = sld [smem:[#allocation3 + %s311]]
        %s313 = sadd.s32 %s299, 7
        %s314 = sld [smem:[#allocation3 + %s313]]
        %s315 = sadd.s32 %s299, 8
        %s316 = sld [smem:[#allocation3 + %s315]]
        %s317 = sadd.s32 %s299, 9
        %s318 = sld [smem:[#allocation3 + %s317]]
        %s319 = sadd.s32 %s299, 10
        %s320 = sld [smem:[#allocation3 + %s319]]
        %s321 = sadd.s32 %s299, 11
        %s322 = sld [smem:[#allocation3 + %s321]]
        %s323 = sadd.s32 %s299, 12
        %s324 = sld [smem:[#allocation3 + %s323]]
        %s325 = sadd.s32 %s299, 13
        %s326 = sld [smem:[#allocation3 + %s325]]
        %s327 = sadd.s32 %s299, 14
        %s328 = sld [smem:[#allocation3 + %s327]]
        %s329 = sadd.s32 %s299, 15
        %s330 = sld [smem:[#allocation3 + %s329]]
        %s331 = sadd.s32 %s299, 16
        %s332 = sld [smem:[#allocation3 + %s331]]
        %s333 = sadd.s32 %s299, 17
        %s334 = sld [smem:[#allocation3 + %s333]]
        %s335 = sadd.s32 %s299, 18
        %s336 = sld [smem:[#allocation3 + %s335]]
        %s337 = sadd.s32 %s299, 19
        %s338 = sld [smem:[#allocation3 + %s337]]
        %s339 = sadd.s32 %s299, 20
        %s340 = sld [smem:[#allocation3 + %s339]]
        %s341 = sadd.s32 %s299, 21
        %s342 = sld [smem:[#allocation3 + %s341]]
        %s343 = sadd.s32 %s299, 22
        %s344 = sld [smem:[#allocation3 + %s343]]
        %s345 = sadd.s32 %s299, 23
        %s346 = sld [smem:[#allocation3 + %s345]]
        %v347 = vstv %s320
        %v348 = vmul.f32 %v347, %v221
        %v349 = vstv %s318
        %v350 = vadd.f32 %v349, %v348
        %v351 = vstv %s322
        %v352 = vmul.f32 %v351, %v222
        %v353 = vadd.f32 %v350, %v352
        %v354 = vstv %s344
        %v355 = vmul.f32 %v354, %v221
        %v356 = vstv %s342
        %v357 = vadd.f32 %v356, %v355
        %v358 = vstv %s346
        %v359 = vmul.f32 %v358, %v222
        %v360 = vadd.f32 %v357, %v359
        %v361 = vld [vmem:[#allocation2] sm:$0xff]
        %v362 = vstv %s300
        %v363 = vmul.f32 %v362, %v361
        %v364 = vadd.f32 %v353, %v363
        %v365 = vstv %s324
        %v366 = vmul.f32 %v365, %v361
        %v367 = vadd.f32 %v360, %v366
        %s368 = scalar_lea.vmem [#allocation2], 8
        %v369 = vld [vmem:[%s368] sm:$0xff]
        %v370 = vstv %s302
        %v371 = vmul.f32 %v370, %v369
        %v372 = vadd.f32 %v364, %v371
        %v373 = vstv %s326
        %v374 = vmul.f32 %v373, %v369
        %v375 = vadd.f32 %v367, %v374
        %s376 = scalar_lea.vmem [#allocation2], 16
        %v377 = vld [vmem:[%s376] sm:$0xff]
        %v378 = vstv %s304
        %v379 = vmul.f32 %v378, %v377
        %v380 = vadd.f32 %v372, %v379
        %v381 = vstv %s328
        %v382 = vmul.f32 %v381, %v377
        %v383 = vadd.f32 %v375, %v382
        %s384 = scalar_lea.vmem [#allocation2], 24
        %v385 = vld [vmem:[%s384] sm:$0xff]
        %v386 = vstv %s306
        %v387 = vmul.f32 %v386, %v385
        %v388 = vadd.f32 %v380, %v387
        %v389 = vstv %s330
        %v390 = vmul.f32 %v389, %v385
        %v391 = vadd.f32 %v383, %v390
        %s392 = scalar_lea.vmem [#allocation2], 32
        %v393 = vld [vmem:[%s392] sm:$0xff]
        %v394 = vstv %s308
        %v395 = vmul.f32 %v394, %v393
        %v396 = vadd.f32 %v388, %v395
        %v397 = vstv %s332
        %v398 = vmul.f32 %v397, %v393
        %v399 = vadd.f32 %v391, %v398
        %s400 = scalar_lea.vmem [#allocation2], 40
        %v401 = vld [vmem:[%s400] sm:$0xff]
        %v402 = vstv %s310
        %v403 = vmul.f32 %v402, %v401
        %v404 = vadd.f32 %v396, %v403
        %v405 = vstv %s334
        %v406 = vmul.f32 %v405, %v401
        %v407 = vadd.f32 %v399, %v406
        %s408 = scalar_lea.vmem [#allocation2], 48
        %v409 = vld [vmem:[%s408] sm:$0xff]
        %v410 = vstv %s312
        %v411 = vmul.f32 %v410, %v409
        %v412 = vadd.f32 %v404, %v411
        %v413 = vstv %s336
        %v414 = vmul.f32 %v413, %v409
        %v415 = vadd.f32 %v407, %v414
        %s416 = scalar_lea.vmem [#allocation2], 56
        %v417 = vld [vmem:[%s416] sm:$0xff]
        %v418 = vstv %s314
        %v419 = vmul.f32 %v418, %v417
        %v420 = vadd.f32 %v412, %v419
        %v421 = vstv %s338
        %v422 = vmul.f32 %v421, %v417
        %v423 = vadd.f32 %v415, %v422
        %s424 = scalar_lea.vmem [#allocation2], 64
        %v425 = vld [vmem:[%s424] sm:$0xff]
        %v426 = vstv %s316
        %v427 = vmul.f32 %v426, %v425
        %v428 = vadd.f32 %v420, %v427
        %v429 = vstv %s340
        %v430 = vmul.f32 %v429, %v425
        %v431 = vadd.f32 %v423, %v430
        %432 = vst [vmem:[%s220] sm:$0xff] %v428
        %s433 = scalar_lea.vmem %s220, 8 [#allocation10]
        %434 = vst [vmem:[%s433] sm:$0xff] %v431
        %s435 = sand.u32 %s115, 1
        %s436 = scalar_lea.sflag [#allocation5], %s435
        %s437 = sand.u32 %s115, 1
        %s438 = smul.addr %s437, 16
        %s439 = scalar_lea.vmem [#allocation10], %s438
        // Predicated region
        $region49: #{tpu_custom_call.1} parent=31 // pred_check
          %p440 = pneg %p125
        $region50: #{tpu_custom_call.1} parent=31 // pred_check_branch
          %442 = sbr.rel (%p440) target = $region52
        $region51: #{tpu_custom_call.1} parent=31 // pred_region
          %444 = vsyncadd %s436, 0
          %s445 = smul.addr %s25, 2
          %s446 = sadd.s32 %s24, %s445
          %s447 = smul.addr %s446, 8
          %s448 = scalar_lea.hbm %s3, %s447
          %s449 = sshll.u32 %s439, 4
          %s450 = int_to_ptr.vmem [resolvable:$true] %s449
          %s451 = sshll.u32 %s448, 4
          %s452 = int_to_ptr.hbm [resolvable:$true] %s451
          %457 = dma.vmem_to_hbm [thread:$0]  %s450, 256, %s452, %s436, 128, 128, 8
        $region52: #{tpu_custom_call.1} parent=31 // pred_fallthru
          _
      $region32: #{tpu_custom_call.1} parent=5 // pred_fallthru
        _
      %p458 = scmp.le.s32.totalorder 2, %s15
      // Predicated region
      $region53: #{tpu_custom_call.1} parent=5 // pred_check
        %p459 = pneg %p458
      $region54: #{tpu_custom_call.1} parent=5 // pred_check_branch
        %461 = sbr.rel (%p459) target = $region56
      $region55: #{tpu_custom_call.1} parent=5 // pred_region
        %s462 = ssub.s32 %s15, 2
        // Predicated region
        $region57: #{tpu_custom_call.1} parent=55 // pred_check
          %p463 = pneg %p131
        $region58: #{tpu_custom_call.1} parent=55 // pred_check_branch
          %465 = sbr.rel (%p463) target = $region60
        $region59: #{tpu_custom_call.1} parent=55 // pred_region
          %s466 = sand.u32 %s116, 1
          %s467 = scalar_lea.sflag [#allocation5], %s466
          %s468 = sand.u32 %s116, 1
          %s469 = smul.addr %s468, 16
          %s470 = scalar_lea.vmem [#allocation10], %s469
          %472 = dma.done %s467, 256
        $region60: #{tpu_custom_call.1} parent=55 // pred_fallthru
          _
      $region56: #{tpu_custom_call.1} parent=5 // pred_fallthru
        _
    $region6: #{tpu_custom_call.1} parent=1 // loop_footer
      %s19 = sadd.s32 1, %s15
    $region7: #{tpu_custom_call.1} parent=1 // loop_footer_branch
      %14 = sbr.rel target = $region3
    $region8: #{tpu_custom_call.1} parent=1 // loop_exit
      _
    %473 = vsyncpa [#allocation4], 1
    %s474 = scalar_lea.sflag [#allocation4], 1
    %475 = vsyncpa %s474, 1
    %476 = vsyncpa [#allocation9], 1
    %477 = vsyncpa [#allocation5], 1
    %s478 = scalar_lea.sflag [#allocation5], 1
    %479 = vsyncpa %s478, 1
    %480 = vsyncpa [#allocation6], 1
    %s481 = scalar_lea.sflag [#allocation6], 1
    %482 = vsyncpa %s481, 1

</llo_original>
